<compile_context>
chip_gen: v7x
topology: tpu7x:2x2x1
jax: 0.10.0
libtpu: 0.0.40
codegen_flags: <defaults>
</compile_context>

<pallas_src>
import functools
import math

import jax
import jax.numpy as jnp
from jax import lax
from jax.experimental import pallas as pl
from jax.experimental.pallas import tpu as pltpu


def _rope(t, cos, sin, head_dim):
    # rotate_half(t) = concat(-t[..., d/2:], t[..., :d/2]); applied in f32.
    # (pltpu.roll + a sign-folded sin would move this onto the XLU slot; the
    #  slice+concat form is kept here for lowering robustness at head_dim=16.)
    t1 = t[:, : head_dim // 2]
    t2 = t[:, head_dim // 2:]
    return t * cos + jnp.concatenate([-t2, t1], axis=-1) * sin


def llama_attention_kernel(x_q_ref, x_kv_ref, wq_ref, wkv_ref, wo_ref,
                           cos_ref, sin_ref, o_ref,
                           q_sc, m_sc, l_sc, acc_sc, o_acc,
                           *, head_dim, block_kv):
    h = pl.program_id(1)
    kv = pl.program_id(2)
    n_heads = pl.num_programs(1)
    n_kv = pl.num_programs(2)
    d = head_dim
    cdt = x_q_ref.dtype                       # compute dtype for MXU inputs
    scale = 1.0 / math.sqrt(d)

    # ---- whole-output accumulator init (first head, first kv block) --------
    @pl.when(jnp.logical_and(h == 0, kv == 0))
    def _init_output():
        o_acc[...] = jnp.zeros_like(o_acc)

    # ---- per-head init: project + RoPE + scale Q once; reset flash state ---
    @pl.when(kv == 0)
    def _init_head():
        xq = x_q_ref[0]                                       # (S, H)
        q = jnp.dot(xq, wq_ref[0],                            # (S, d), f32 acc
                    preferred_element_type=jnp.float32)
        q = q * scale                                         # fold 1/sqrt(d) into Q
        q = _rope(q, cos_ref[...], sin_ref[...], d)
        q_sc[...] = q.astype(cdt)
        m_sc[...] = jnp.full_like(m_sc, -jnp.inf)
        l_sc[...] = jnp.zeros_like(l_sc)
        acc_sc[...] = jnp.zeros_like(acc_sc)

    # ---- per (head, kv block): fused K|V projection + RoPE(K) --------------
    xkv = x_kv_ref[0]                                         # (BKV, H)
    kvp = jnp.dot(xkv, wkv_ref[0],                            # (BKV, 2d), one matmul
                  preferred_element_type=jnp.float32)
    k = kvp[:, :d]                                            # d-aligned slices
    v = kvp[:, d:]                                            # (128-aligned for real Llama)
    kv_start = pl.multiple_of(kv * block_kv, block_kv)
    cos_k = cos_ref[pl.ds(kv_start, block_kv), :]
    sin_k = sin_ref[pl.ds(kv_start, block_kv), :]
    k = _rope(k, cos_k, sin_k, d).astype(cdt)
    v = v.astype(cdt)

    # scores: contract last dims of Q and K directly (no explicit K transpose)
    s = lax.dot_general(q_sc[...], k,
                        dimension_numbers=(((1,), (1,)), ((), ())),
                        preferred_element_type=jnp.float32)   # (S, BKV) f32

    # ---- online softmax (flash) update, all math in f32 --------------------
    m_prev = m_sc[...]
    m_new = jnp.maximum(m_prev, jnp.max(s, axis=-1, keepdims=True))
    alpha = jnp.exp(m_prev - m_new)
    p = jnp.exp(s - m_new)
    l_sc[...] = alpha * l_sc[...] + jnp.sum(p, axis=-1, keepdims=True)
    acc_sc[...] = alpha * acc_sc[...] + jnp.dot(
        p.astype(cdt), v, preferred_element_type=jnp.float32)  # probs in MXU dtype
    m_sc[...] = m_new

    # ---- per-head finalize: normalize, fold through this head's o_proj -----
    @pl.when(kv == n_kv - 1)
    def _finalize_head():
        attn = acc_sc[...] * pl.reciprocal(l_sc[...], approx=True)   # (S, d)
        o_acc[...] += jnp.dot(attn.astype(cdt), wo_ref[0],
                              preferred_element_type=jnp.float32)

    # ---- write the (S, H) output tile once per batch element ---------------
    @pl.when(jnp.logical_and(h == n_heads - 1, kv == n_kv - 1))
    def _store_output():
        o_ref[0] = o_acc[...].astype(o_ref.dtype)


def llama_attention(hidden_states, wq_t, wk_t, wv_t, wo_t, cos, sin,
                    *, num_heads, head_dim, block_kv=None):
    """hidden_states: (B, S, H); w*_t: (H, H) already transposed to (in, out);
    cos/sin: (S, head_dim).  Returns attn_output of shape (B, S, H)."""
    B, S, H = hidden_states.shape
    nh, d = num_heads, head_dim
    assert nh * d == H
    if block_kv is None:
        block_kv = min(S, 512)
    assert S % block_kv == 0 and (block_kv == S or block_kv % 8 == 0)
    n_kv = S // block_kv

    # Reorganize weights so each head's slice is a full, lane-dense block.
    wq_h = wq_t.reshape(H, nh, d).transpose(1, 0, 2)                 # (nh, H, d)
    wk_h = wk_t.reshape(H, nh, d).transpose(1, 0, 2)
    wv_h = wv_t.reshape(H, nh, d).transpose(1, 0, 2)
    wkv_h = jnp.concatenate([wk_h, wv_h], axis=-1)                   # (nh, H, 2d)
    wo_h = wo_t.reshape(nh, d, H)                                    # (nh, d, H)

    kernel = functools.partial(llama_attention_kernel,
                               head_dim=d, block_kv=block_kv)
    return pl.pallas_call(
        kernel,
        out_shape=jax.ShapeDtypeStruct((B, S, H), hidden_states.dtype),
        grid_spec=pltpu.PrefetchScalarGridSpec(
            num_scalar_prefetch=0,
            grid=(B, nh, n_kv),
            in_specs=[
                pl.BlockSpec((1, S, H), lambda b, h, kv: (b, 0, 0)),          # x (query rows)
                pl.BlockSpec((1, block_kv, H), lambda b, h, kv: (b, kv, 0)),  # x (kv rows)
                pl.BlockSpec((1, H, d), lambda b, h, kv: (h, 0, 0)),          # wq, head h
                pl.BlockSpec((1, H, 2 * d), lambda b, h, kv: (h, 0, 0)),      # w[k|v], head h
                pl.BlockSpec((1, d, H), lambda b, h, kv: (h, 0, 0)),          # wo, head h
                pl.BlockSpec((S, d), lambda b, h, kv: (0, 0)),                # cos
                pl.BlockSpec((S, d), lambda b, h, kv: (0, 0)),                # sin
            ],
            out_specs=pl.BlockSpec((1, S, H), lambda b, h, kv: (b, 0, 0)),
            scratch_shapes=[
                pltpu.VMEM((S, d), hidden_states.dtype),   # Q (post-RoPE, scaled)
                pltpu.VMEM((S, 1), jnp.float32),           # running max
                pltpu.VMEM((S, 1), jnp.float32),           # running denom
                pltpu.VMEM((S, d), jnp.float32),           # running P@V accumulator
                pltpu.VMEM((S, H), jnp.float32),           # output accumulator (all heads)
            ],
        ),
        compiler_params=pltpu.CompilerParams(
            dimension_semantics=("parallel", "arbitrary", "arbitrary"),
            vmem_limit_bytes=32 * 1024 * 1024,
        ),
    )(hidden_states, hidden_states, wq_h, wkv_h, wo_h, cos, sin)


# ---------------- pure-JAX reference (mirrors the PyTorch forward) -----------
def ref_forward(x, wq_t, wk_t, wv_t, wo_t, cos, sin, num_heads, head_dim):
    B, S, H = x.shape
    q = (x @ wq_t).reshape(B, S, num_heads, head_dim).transpose(0, 2, 1, 3)
    k = (x @ wk_t).reshape(B, S, num_heads, head_dim).transpose(0, 2, 1, 3)
    v = (x @ wv_t).reshape(B, S, num_heads, head_dim).transpose(0, 2, 1, 3)

    def rot(t):
        t1, t2 = t[..., : head_dim // 2], t[..., head_dim // 2:]
        return jnp.concatenate([-t2, t1], axis=-1)

    c = cos[None, None]
    s = sin[None, None]
    q = q * c + rot(q) * s
    k = k * c + rot(k) * s

    attn = jnp.einsum('bhqd,bhkd->bhqk', q, k) / math.sqrt(head_dim)
    probs = jax.nn.softmax(attn.astype(jnp.float32), axis=-1).astype(x.dtype)
    o = jnp.einsum('bhqk,bhkd->bhqd', probs, v)
    o = o.transpose(0, 2, 1, 3).reshape(B, S, H)
    return o @ wo_t


if __name__ == "__main__":
    # config: hidden_size=64, num_attention_heads=4 -> head_dim=16
    B, S, H = 2, 16, 64
    num_heads = 4
    head_dim = H // num_heads

    key = jax.random.PRNGKey(0)
    kx, kq, kk, kv_, ko = jax.random.split(key, 5)

    hidden_states = jax.random.normal(kx, (B, S, H), dtype=jnp.float32)

    # nn.Linear weights are (out, in); forward applies x @ W.T.
    wq = jax.random.normal(kq, (H, H), dtype=jnp.float32) * 0.02
    wk = jax.random.normal(kk, (H, H), dtype=jnp.float32) * 0.02
    wv = jax.random.normal(kv_, (H, H), dtype=jnp.float32) * 0.02
    wo = jax.random.normal(ko, (H, H), dtype=jnp.float32) * 0.02

    # rotary tables (as HF LlamaRotaryEmbedding would build them)
    inv_freq = 1.0 / (10000.0 ** (jnp.arange(0, head_dim, 2, dtype=jnp.float32) / head_dim))
    positions = jnp.arange(S, dtype=jnp.float32)
    freqs = jnp.einsum('s,d->sd', positions, inv_freq)          # (S, D/2)
    emb = jnp.concatenate([freqs, freqs], axis=-1)              # (S, D)
    cos = jnp.cos(emb)
    sin = jnp.sin(emb)

    ref = ref_forward(hidden_states, wq.T, wk.T, wv.T, wo.T, cos, sin,
                      num_heads, head_dim)

    # f32 run, two KV blocks (exercises the online-softmax accumulation path)
    out = llama_attention(hidden_states, wq.T, wk.T, wv.T, wo.T, cos, sin,
                          num_heads=num_heads, head_dim=head_dim, block_kv=8)
    out = jax.block_until_ready(out)
    assert out.shape == (B, S, H)
    err = jnp.max(jnp.abs(out - ref))
    assert jnp.allclose(out, ref, atol=1e-3, rtol=1e-3), f"max abs err {err}"

    # bf16 run (MXU-friendly dtype with f32 accumulation); cos/sin stay f32
    to_bf16 = lambda a: a.astype(jnp.bfloat16)
    out_bf = llama_attention(to_bf16(hidden_states), to_bf16(wq.T), to_bf16(wk.T),
                             to_bf16(wv.T), to_bf16(wo.T), cos, sin,
                             num_heads=num_heads, head_dim=head_dim, block_kv=S)
    out_bf = jax.block_until_ready(out_bf)
    err_bf = jnp.max(jnp.abs(out_bf.astype(jnp.float32) - ref))
    assert err_bf < 1e-2, f"bf16 max abs err {err_bf}"

    print("KERNEL_OK")
</pallas_src>

<mosaic_0001>
module attributes {stable_mosaic.version = 11 : i64} {
  func.func @llama_attention_kernel(%arg0: i32, %arg1: i32, %arg2: i32, %arg3: memref<1x16x64xf32, #tpu.memory_space<vmem>>, %arg4: memref<1x8x64xf32, #tpu.memory_space<vmem>>, %arg5: memref<1x64x16xf32, #tpu.memory_space<vmem>>, %arg6: memref<1x64x32xf32, #tpu.memory_space<vmem>>, %arg7: memref<1x16x64xf32, #tpu.memory_space<vmem>>, %arg8: memref<16x16xf32, #tpu.memory_space<vmem>>, %arg9: memref<16x16xf32, #tpu.memory_space<vmem>>, %arg10: memref<1x16x64xf32, #tpu.memory_space<vmem>>, %arg11: memref<16x16xf32, #tpu.memory_space<vmem>>, %arg12: memref<16x1xf32, #tpu.memory_space<vmem>>, %arg13: memref<16x1xf32, #tpu.memory_space<vmem>>, %arg14: memref<16x16xf32, #tpu.memory_space<vmem>>, %arg15: memref<16x64xf32, #tpu.memory_space<vmem>>) attributes {dimension_semantics = [#tpu.dimension_semantics<parallel>, #tpu.dimension_semantics<arbitrary>, #tpu.dimension_semantics<arbitrary>], iteration_bounds = array<i64: 2, 4, 2>, scalar_prefetch = 0 : i64, scratch_operands = 5 : i64, tpu.core_type = #tpu.core_type<tc>, window_params = [{transform_indices = @transform_0, window_bounds = array<i64: 1, 16, 64>}, {transform_indices = @transform_1, window_bounds = array<i64: 1, 8, 64>}, {transform_indices = @transform_2, window_bounds = array<i64: 1, 64, 16>}, {transform_indices = @transform_3, window_bounds = array<i64: 1, 64, 32>}, {transform_indices = @transform_4, window_bounds = array<i64: 1, 16, 64>}, {pipeline_mode = #tpu.pipeline_mode<synchronous>, transform_indices = @transform_5, window_bounds = array<i64: 16, 16>}, {pipeline_mode = #tpu.pipeline_mode<synchronous>, transform_indices = @transform_6, window_bounds = array<i64: 16, 16>}, {transform_indices = @transform_7, window_bounds = array<i64: 1, 16, 64>}]} {
    %c0_i32 = arith.constant 0 : i32
    %0 = arith.cmpi eq, %arg1, %c0_i32 : i32
    %c0_i32_0 = arith.constant 0 : i32
    %1 = arith.cmpi eq, %arg2, %c0_i32_0 : i32
    %2 = arith.andi %0, %1 : i1
    %3 = arith.extui %2 : i1 to i32
    %c0_i32_1 = arith.constant 0 : i32
    %4 = arith.cmpi ne, %3, %c0_i32_1 : i32
    scf.if %4 {
      %cst_33 = arith.constant 0.000000e+00 : f32
      %61 = vector.broadcast %cst_33 : f32 to vector<16x64xf32>
      %c0_34 = arith.constant 0 : index
      %c0_35 = arith.constant 0 : index
      %62 = vector.load %arg15[%c0_34, %c0_35] : memref<16x64xf32, #tpu.memory_space<vmem>>, vector<16x64xf32>
      tpu.vector_store %arg15[%c0_34, %c0_35], %61 {strides = array<i32>} : memref<16x64xf32, #tpu.memory_space<vmem>>, vector<16x64xf32>,
    } else {
    }
    %c0_i32_2 = arith.constant 0 : i32
    %5 = arith.cmpi eq, %arg2, %c0_i32_2 : i32
    %6 = arith.extui %5 : i1 to i32
    %c0_i32_3 = arith.constant 0 : i32
    %7 = arith.cmpi ne, %6, %c0_i32_3 : i32
    scf.if %7 {
      %c0_33 = arith.constant 0 : index
      %c0_34 = arith.constant 0 : index
      %c0_35 = arith.constant 0 : index
      %61 = vector.load %arg3[%c0_33, %c0_34, %c0_35] : memref<1x16x64xf32, #tpu.memory_space<vmem>>, vector<1x16x64xf32>
      %62 = vector.shape_cast %61 : vector<1x16x64xf32> to vector<16x64xf32>
      %c0_36 = arith.constant 0 : index
      %c0_37 = arith.constant 0 : index
      %c0_38 = arith.constant 0 : index
      %63 = vector.load %arg5[%c0_36, %c0_37, %c0_38] : memref<1x64x16xf32, #tpu.memory_space<vmem>>, vector<1x64x16xf32>
      %64 = vector.shape_cast %63 : vector<1x64x16xf32> to vector<64x16xf32>
      %cst_39 = arith.constant dense<0.000000e+00> : vector<16x16xf32>
      %65 = tpu.matmul %62, %64, %cst_39 {dimension_numbers = #tpu.dot_dimension_numbers<[1], [0], [0], [1], [0, 0, 1, 1], [], []>} : vector<16x64xf32>, vector<64x16xf32>, vector<16x16xf32> -> vector<16x16xf32>
      %cst_40 = arith.constant 2.500000e-01 : f32
      %66 = vector.broadcast %cst_40 : f32 to vector<16x16xf32>
      %67 = arith.mulf %65, %66 : vector<16x16xf32>
      %c0_41 = arith.constant 0 : index
      %c0_42 = arith.constant 0 : index
      %68 = vector.load %arg8[%c0_41, %c0_42] : memref<16x16xf32, #tpu.memory_space<vmem>>, vector<16x16xf32>
      %c0_43 = arith.constant 0 : index
      %c0_44 = arith.constant 0 : index
      %69 = vector.load %arg9[%c0_43, %c0_44] : memref<16x16xf32, #tpu.memory_space<vmem>>, vector<16x16xf32>
      %70 = vector.extract_strided_slice %67 {offsets = [0, 0], sizes = [16, 8], strides = [1, 1]} : vector<16x16xf32> to vector<16x8xf32>
      %71 = vector.extract_strided_slice %67 {offsets = [0, 8], sizes = [16, 8], strides = [1, 1]} : vector<16x16xf32> to vector<16x8xf32>
      %72 = arith.mulf %67, %68 : vector<16x16xf32>
      %cst_45 = arith.constant 0.000000e+00 : f32
      %73 = vector.broadcast %cst_45 : f32 to vector<16x8xf32>
      %74 = arith.subf %73, %71 : vector<16x8xf32>
      %75 = tpu.concatenate %74, %70 in 1 : vector<16x8xf32>, vector<16x8xf32> -> vector<16x16xf32>
      %76 = arith.mulf %75, %69 : vector<16x16xf32>
      %77 = arith.addf %72, %76 : vector<16x16xf32>
      %c0_46 = arith.constant 0 : index
      %c0_47 = arith.constant 0 : index
      %78 = vector.load %arg11[%c0_46, %c0_47] : memref<16x16xf32, #tpu.memory_space<vmem>>, vector<16x16xf32>
      tpu.vector_store %arg11[%c0_46, %c0_47], %77 {strides = array<i32>} : memref<16x16xf32, #tpu.memory_space<vmem>>, vector<16x16xf32>,
      %cst_48 = arith.constant 0xFF800000 : f32
      %79 = vector.broadcast %cst_48 : f32 to vector<16x1xf32>
      %c0_49 = arith.constant 0 : index
      %c0_50 = arith.constant 0 : index
      %80 = vector.load %arg12[%c0_49, %c0_50] : memref<16x1xf32, #tpu.memory_space<vmem>>, vector<16x1xf32>
      tpu.vector_store %arg12[%c0_49, %c0_50], %79 {strides = array<i32>} : memref<16x1xf32, #tpu.memory_space<vmem>>, vector<16x1xf32>,
      %cst_51 = arith.constant 0.000000e+00 : f32
      %81 = vector.broadcast %cst_51 : f32 to vector<16x1xf32>
      %c0_52 = arith.constant 0 : index
      %c0_53 = arith.constant 0 : index
      %82 = vector.load %arg13[%c0_52, %c0_53] : memref<16x1xf32, #tpu.memory_space<vmem>>, vector<16x1xf32>
      tpu.vector_store %arg13[%c0_52, %c0_53], %81 {strides = array<i32>} : memref<16x1xf32, #tpu.memory_space<vmem>>, vector<16x1xf32>,
      %cst_54 = arith.constant 0.000000e+00 : f32
      %83 = vector.broadcast %cst_54 : f32 to vector<16x16xf32>
      %c0_55 = arith.constant 0 : index
      %c0_56 = arith.constant 0 : index
      %84 = vector.load %arg14[%c0_55, %c0_56] : memref<16x16xf32, #tpu.memory_space<vmem>>, vector<16x16xf32>
      tpu.vector_store %arg14[%c0_55, %c0_56], %83 {strides = array<i32>} : memref<16x16xf32, #tpu.memory_space<vmem>>, vector<16x16xf32>,
    } else {
    }
    %c0 = arith.constant 0 : index
    %c0_4 = arith.constant 0 : index
    %c0_5 = arith.constant 0 : index
    %8 = vector.load %arg4[%c0, %c0_4, %c0_5] : memref<1x8x64xf32, #tpu.memory_space<vmem>>, vector<1x8x64xf32>
    %9 = vector.shape_cast %8 : vector<1x8x64xf32> to vector<8x64xf32>
    %c0_6 = arith.constant 0 : index
    %c0_7 = arith.constant 0 : index
    %c0_8 = arith.constant 0 : index
    %10 = vector.load %arg6[%c0_6, %c0_7, %c0_8] : memref<1x64x32xf32, #tpu.memory_space<vmem>>, vector<1x64x32xf32>
    %11 = vector.shape_cast %10 : vector<1x64x32xf32> to vector<64x32xf32>
    %cst = arith.constant dense<0.000000e+00> : vector<8x32xf32>
    %12 = tpu.matmul %9, %11, %cst {dimension_numbers = #tpu.dot_dimension_numbers<[1], [0], [0], [1], [0, 0, 1, 1], [], []>} : vector<8x64xf32>, vector<64x32xf32>, vector<8x32xf32> -> vector<8x32xf32>
    %13 = vector.extract_strided_slice %12 {offsets = [0, 0], sizes = [8, 16], strides = [1, 1]} : vector<8x32xf32> to vector<8x16xf32>
    %14 = vector.extract_strided_slice %12 {offsets = [0, 16], sizes = [8, 16], strides = [1, 1]} : vector<8x32xf32> to vector<8x16xf32>
    %c8_i32 = arith.constant 8 : i32
    %15 = arith.muli %arg2, %c8_i32 : i32
    %16 = tpu.assume_multiple %15, 8 : i32
    %17 = arith.index_cast %16 : i32 to index
    %c0_9 = arith.constant 0 : index
    %18 = vector.load %arg8[%17, %c0_9] : memref<16x16xf32, #tpu.memory_space<vmem>>, vector<8x16xf32>
    %19 = arith.index_cast %16 : i32 to index
    %c0_10 = arith.constant 0 : index
    %20 = vector.load %arg9[%19, %c0_10] : memref<16x16xf32, #tpu.memory_space<vmem>>, vector<8x16xf32>
    %21 = vector.extract_strided_slice %13 {offsets = [0, 0], sizes = [8, 8], strides = [1, 1]} : vector<8x16xf32> to vector<8x8xf32>
    %22 = vector.extract_strided_slice %13 {offsets = [0, 8], sizes = [8, 8], strides = [1, 1]} : vector<8x16xf32> to vector<8x8xf32>
    %23 = arith.mulf %13, %18 : vector<8x16xf32>
    %cst_11 = arith.constant 0.000000e+00 : f32
    %24 = vector.broadcast %cst_11 : f32 to vector<8x8xf32>
    %25 = arith.subf %24, %22 : vector<8x8xf32>
    %26 = tpu.concatenate %25, %21 in 1 : vector<8x8xf32>, vector<8x8xf32> -> vector<8x16xf32>
    %27 = arith.mulf %26, %20 : vector<8x16xf32>
    %28 = arith.addf %23, %27 : vector<8x16xf32>
    %c0_12 = arith.constant 0 : index
    %c0_13 = arith.constant 0 : index
    %29 = vector.load %arg11[%c0_12, %c0_13] : memref<16x16xf32, #tpu.memory_space<vmem>>, vector<16x16xf32>
    %cst_14 = arith.constant dense<0.000000e+00> : vector<16x8xf32>
    %30 = tpu.matmul %29, %28, %cst_14 {dimension_numbers = #tpu.dot_dimension_numbers<[1], [1], [0], [0], [0, 0, 1, 0], [], []>} : vector<16x16xf32>, vector<8x16xf32>, vector<16x8xf32> -> vector<16x8xf32>
    %c0_15 = arith.constant 0 : index
    %c0_16 = arith.constant 0 : index
    %31 = vector.load %arg12[%c0_15, %c0_16] : memref<16x1xf32, #tpu.memory_space<vmem>>, vector<16x1xf32>
    %cst_17 = arith.constant dense<0xFF800000> : vector<16xf32>
    %32 = vector.multi_reduction <maximumf>, %30, %cst_17 [1] : vector<16x8xf32> to vector<16xf32>
    %33 = vector.shape_cast %32 : vector<16xf32> to vector<16x1xf32>
    %34 = arith.maximumf %31, %33 : vector<16x1xf32>
    %35 = arith.subf %31, %34 : vector<16x1xf32>
    %36 = math.exp %35 : vector<16x1xf32>
    %37 = vector.broadcast %34 : vector<16x1xf32> to vector<16x8xf32>
    %38 = arith.subf %30, %37 : vector<16x8xf32>
    %39 = math.exp %38 : vector<16x8xf32>
    %c0_18 = arith.constant 0 : index
    %c0_19 = arith.constant 0 : index
    %40 = vector.load %arg13[%c0_18, %c0_19] : memref<16x1xf32, #tpu.memory_space<vmem>>, vector<16x1xf32>
    %41 = arith.mulf %36, %40 : vector<16x1xf32>
    %cst_20 = arith.constant dense<0.000000e+00> : vector<16xf32>
    %42 = vector.multi_reduction <add>, %39, %cst_20 [1] : vector<16x8xf32> to vector<16xf32>
    %43 = vector.shape_cast %42 : vector<16xf32> to vector<16x1xf32>
    %44 = arith.addf %41, %43 : vector<16x1xf32>
    %c0_21 = arith.constant 0 : index
    %c0_22 = arith.constant 0 : index
    %45 = vector.load %arg13[%c0_21, %c0_22] : memref<16x1xf32, #tpu.memory_space<vmem>>, vector<16x1xf32>
    tpu.vector_store %arg13[%c0_21, %c0_22], %44 {strides = array<i32>} : memref<16x1xf32, #tpu.memory_space<vmem>>, vector<16x1xf32>,
    %c0_23 = arith.constant 0 : index
    %c0_24 = arith.constant 0 : index
    %46 = vector.load %arg14[%c0_23, %c0_24] : memref<16x16xf32, #tpu.memory_space<vmem>>, vector<16x16xf32>
    %47 = vector.broadcast %36 : vector<16x1xf32> to vector<16x16xf32>
    %48 = arith.mulf %47, %46 : vector<16x16xf32>
    %cst_25 = arith.constant dense<0.000000e+00> : vector<16x16xf32>
    %49 = tpu.matmul %39, %14, %cst_25 {dimension_numbers = #tpu.dot_dimension_numbers<[1], [0], [0], [1], [0, 0, 1, 1], [], []>} : vector<16x8xf32>, vector<8x16xf32>, vector<16x16xf32> -> vector<16x16xf32>
    %50 = arith.addf %48, %49 : vector<16x16xf32>
    %c0_26 = arith.constant 0 : index
    %c0_27 = arith.constant 0 : index
    %51 = vector.load %arg14[%c0_26, %c0_27] : memref<16x16xf32, #tpu.memory_space<vmem>>, vector<16x16xf32>
    tpu.vector_store %arg14[%c0_26, %c0_27], %50 {strides = array<i32>} : memref<16x16xf32, #tpu.memory_space<vmem>>, vector<16x16xf32>,
    %c0_28 = arith.constant 0 : index
    %c0_29 = arith.constant 0 : index
    %52 = vector.load %arg12[%c0_28, %c0_29] : memref<16x1xf32, #tpu.memory_space<vmem>>, vector<16x1xf32>
    tpu.vector_store %arg12[%c0_28, %c0_29], %34 {strides = array<i32>} : memref<16x1xf32, #tpu.memory_space<vmem>>, vector<16x1xf32>,
    %c1_i32 = arith.constant 1 : i32
    %53 = arith.cmpi eq, %arg2, %c1_i32 : i32
    %54 = arith.extui %53 : i1 to i32
    %c0_i32_30 = arith.constant 0 : i32
    %55 = arith.cmpi ne, %54, %c0_i32_30 : i32
    scf.if %55 {
      %c0_33 = arith.constant 0 : index
      %c0_34 = arith.constant 0 : index
      %61 = vector.load %arg14[%c0_33, %c0_34] : memref<16x16xf32, #tpu.memory_space<vmem>>, vector<16x16xf32>
      %c0_35 = arith.constant 0 : index
      %c0_36 = arith.constant 0 : index
      %62 = vector.load %arg13[%c0_35, %c0_36] : memref<16x1xf32, #tpu.memory_space<vmem>>, vector<16x1xf32>
      %63 = tpu.reciprocal %62 {approx = true} : vector<16x1xf32> -> vector<16x1xf32>
      %64 = vector.broadcast %63 : vector<16x1xf32> to vector<16x16xf32>
      %65 = arith.mulf %61, %64 : vector<16x16xf32>
      %c0_37 = arith.constant 0 : index
      %c0_38 = arith.constant 0 : index
      %66 = vector.load %arg15[%c0_37, %c0_38] : memref<16x64xf32, #tpu.memory_space<vmem>>, vector<16x64xf32>
      %c0_39 = arith.constant 0 : index
      %c0_40 = arith.constant 0 : index
      %c0_41 = arith.constant 0 : index
      %67 = vector.load %arg7[%c0_39, %c0_40, %c0_41] : memref<1x16x64xf32, #tpu.memory_space<vmem>>, vector<1x16x64xf32>
      %68 = vector.shape_cast %67 : vector<1x16x64xf32> to vector<16x64xf32>
      %cst_42 = arith.constant dense<0.000000e+00> : vector<16x64xf32>
      %69 = tpu.matmul %65, %68, %cst_42 {dimension_numbers = #tpu.dot_dimension_numbers<[1], [0], [0], [1], [0, 0, 1, 1], [], []>} : vector<16x16xf32>, vector<16x64xf32>, vector<16x64xf32> -> vector<16x64xf32>
      %70 = arith.addf %66, %69 : vector<16x64xf32>
      %c0_43 = arith.constant 0 : index
      %c0_44 = arith.constant 0 : index
      %71 = vector.load %arg15[%c0_43, %c0_44] : memref<16x64xf32, #tpu.memory_space<vmem>>, vector<16x64xf32>
      tpu.vector_store %arg15[%c0_43, %c0_44], %70 {strides = array<i32>} : memref<16x64xf32, #tpu.memory_space<vmem>>, vector<16x64xf32>,
    } else {
    }
    %c3_i32 = arith.constant 3 : i32
    %56 = arith.cmpi eq, %arg1, %c3_i32 : i32
    %c1_i32_31 = arith.constant 1 : i32
    %57 = arith.cmpi eq, %arg2, %c1_i32_31 : i32
    %58 = arith.andi %56, %57 : i1
    %59 = arith.extui %58 : i1 to i32
    %c0_i32_32 = arith.constant 0 : i32
    %60 = arith.cmpi ne, %59, %c0_i32_32 : i32
    scf.if %60 {
      %c0_33 = arith.constant 0 : index
      %c0_34 = arith.constant 0 : index
      %61 = vector.load %arg15[%c0_33, %c0_34] : memref<16x64xf32, #tpu.memory_space<vmem>>, vector<16x64xf32>
      %c0_35 = arith.constant 0 : index
      %c0_36 = arith.constant 0 : index
      %c0_37 = arith.constant 0 : index
      %62 = vector.load %arg10[%c0_35, %c0_36, %c0_37] : memref<1x16x64xf32, #tpu.memory_space<vmem>>, vector<1x16x64xf32>
      %63 = vector.shape_cast %62 : vector<1x16x64xf32> to vector<16x64xf32>
      %64 = vector.shape_cast %61 : vector<16x64xf32> to vector<1x16x64xf32>
      tpu.vector_store %arg10[%c0_35, %c0_36, %c0_37], %64 {strides = array<i32>} : memref<1x16x64xf32, #tpu.memory_space<vmem>>, vector<1x16x64xf32>,
    } else {
    }
    return
  }
  func.func @transform_0(%arg0: i32, %arg1: i32, %arg2: i32) -> (i32, i32, i32) {
    %c0_i32 = arith.constant 0 : i32
    %c0_i32_0 = arith.constant 0 : i32
    %c0_i32_1 = arith.constant 0 : i32
    return %arg0, %c0_i32, %c0_i32_0 : i32, i32, i32
  }
  func.func @transform_1(%arg0: i32, %arg1: i32, %arg2: i32) -> (i32, i32, i32) {
    %c0_i32 = arith.constant 0 : i32
    %c0_i32_0 = arith.constant 0 : i32
    return %arg0, %arg2, %c0_i32 : i32, i32, i32
  }
  func.func @transform_2(%arg0: i32, %arg1: i32, %arg2: i32) -> (i32, i32, i32) {
    %c0_i32 = arith.constant 0 : i32
    %c0_i32_0 = arith.constant 0 : i32
    %c0_i32_1 = arith.constant 0 : i32
    return %arg1, %c0_i32, %c0_i32_0 : i32, i32, i32
  }
  func.func @transform_3(%arg0: i32, %arg1: i32, %arg2: i32) -> (i32, i32, i32) {
    %c0_i32 = arith.constant 0 : i32
    %c0_i32_0 = arith.constant 0 : i32
    %c0_i32_1 = arith.constant 0 : i32
    return %arg1, %c0_i32, %c0_i32_0 : i32, i32, i32
  }
  func.func @transform_4(%arg0: i32, %arg1: i32, %arg2: i32) -> (i32, i32, i32) {
    %c0_i32 = arith.constant 0 : i32
    %c0_i32_0 = arith.constant 0 : i32
    %c0_i32_1 = arith.constant 0 : i32
    return %arg1, %c0_i32, %c0_i32_0 : i32, i32, i32
  }
  func.func @transform_5(%arg0: i32, %arg1: i32, %arg2: i32) -> (i32, i32) {
    %c0_i32 = arith.constant 0 : i32
    %c0_i32_0 = arith.constant 0 : i32
    %c0_i32_1 = arith.constant 0 : i32
    return %c0_i32, %c0_i32_0 : i32, i32
  }
  func.func @transform_6(%arg0: i32, %arg1: i32, %arg2: i32) -> (i32, i32) {
    %c0_i32 = arith.constant 0 : i32
    %c0_i32_0 = arith.constant 0 : i32
    %c0_i32_1 = arith.constant 0 : i32
    return %c0_i32, %c0_i32_0 : i32, i32
  }
  func.func @transform_7(%arg0: i32, %arg1: i32, %arg2: i32) -> (i32, i32, i32) {
    %c0_i32 = arith.constant 0 : i32
    %c0_i32_0 = arith.constant 0 : i32
    %c0_i32_1 = arith.constant 0 : i32
    return %arg0, %c0_i32, %c0_i32_0 : i32, i32, i32
  }
}

</mosaic_0001>

<llo_original>
// kernel: tpu_custom_call.1
$region0: #{tpu_custom_call.1}
  #allocation0 [shape = 'u32[]', space=smem, size = 0x4, offset = 0x4, fixed_abs, tag = 'smem constant byte address 0x4 - core index']
  #allocation1 [shape = 'u32[144,128]{1,0:T(1,128)}', space=vmem, size = 0x12000, scoped, tag = 'internal scratch']
  #allocation2 [shape = 'f32[16,16]{1,0:T(8,128)}', space=vmem, size = 0x2000, scoped, tag = 'scratch operand']
  #allocation3 [shape = 'f32[16,1]{1,0:T(8,128)}', space=vmem, size = 0x2000, scoped, tag = 'scratch operand']
  #allocation4 [shape = 'f32[16,1]{1,0:T(8,128)}', space=vmem, size = 0x2000, scoped, tag = 'scratch operand']
  #allocation5 [shape = 'f32[16,16]{1,0:T(8,128)}', space=vmem, size = 0x2000, scoped, tag = 'scratch operand']
  #allocation6 [shape = 'f32[16,64]{1,0:T(8,128)}', space=vmem, size = 0x2000, scoped, tag = 'scratch operand']
  %s0 = inlined_call_operand.vmem [shape: f32[2,16,64], index: 0, kind: input, shape index: {}]
  %s1 = inlined_call_operand.vmem [shape: f32[2,16,64], index: 1, kind: input, shape index: {}]
  %s2 = inlined_call_operand.vmem [shape: f32[4,64,16], index: 2, kind: input, shape index: {}]
  %s3 = inlined_call_operand.vmem [shape: f32[4,64,32], index: 3, kind: input, shape index: {}]
  %s4 = inlined_call_operand.vmem [shape: f32[4,16,64], index: 4, kind: input, shape index: {}]
  %s5 = inlined_call_operand.vmem [shape: f32[16,16], index: 5, kind: input, shape index: {}]
  %s6 = inlined_call_operand.vmem [shape: f32[16,16], index: 6, kind: input, shape index: {}]
  %s7 = inlined_call_operand.hbm [shape: f32[2,16,64], index: 7, kind: output, shape index: {}]
  %s8 = sld [smem:[#allocation0]]
  $region77: #{tpu_custom_call.1} parent=0
    _
  %s10 = ssub.s32 1, %s8
  %s11 = scalar_select 0, %s10, %s8
  $region1: #{tpu_custom_call.1} parent=0
    #allocation7 [shape = 'u8[16384]{0}', space=vmem, size = 0x4000, scoped, tag = 'output window, operand 0']
    #allocation8 [shape = 's32[2]{0}', space=sflag, size = 0x8, scoped, tag = 'scoped memory for tpu_custom_call.1']
    %12 = vsyncpa [#allocation8], 0
    %s13 = scalar_lea.sflag [#allocation8], 1
    %14 = vsyncpa %s13, 0
    loop: start=0, step=1, limit=18
    $region2: #{tpu_custom_call.1} parent=1 // loop_pre_header
      _
    $region3: #{tpu_custom_call.1} parent=1 // loop_header
      %s16 = sphi 0, %s20
      %p17 = scmp.ge.s32.totalorder %s16, 18
      %s23 = sphi 0, %s42
      %s24 = sphi 0, %s38
      %s25 = sphi 0, %s34
      %s26 = sphi 0, %s23
      %s27 = sphi 0, %s24
      %s28 = sphi 0, %s25
      %s29 = sphi 0, %s26
      %s30 = sphi 0, %s27
      %s31 = sphi 0, %s28
      %s45 = sphi 0, %s47
      %s48 = sphi 0, %s45
      %s49 = sphi 0, %s48
      %s65 = sphi 0, %s49
      %s73 = sphi 0, %s75
      %s76 = sphi 0, %s73
      %s77 = sphi 0, %s76
      %s93 = sphi 0, %s77
      %s99 = sphi 0, %s101
      %s102 = sphi 0, %s99
      %s103 = sphi 0, %s102
      %s119 = sphi 0, %s103
      %s125 = sphi 0, %s127
      %s128 = sphi 0, %s125
      %s129 = sphi 0, %s128
      %s145 = sphi 0, %s129
      %s151 = sphi 0, %s153
      %s154 = sphi 0, %s151
      %s155 = sphi 0, %s154
      %s171 = sphi 0, %s155
      %s175 = sphi 0, %s175
      %s177 = sphi 0, %s175
      %s178 = sphi 0, %s177
      %s192 = sphi 0, %s178
      %s196 = sphi 0, %s196
      %s198 = sphi 0, %s196
      %s199 = sphi 0, %s198
      %s213 = sphi 0, %s199
      %s219 = sphi 0, %s221
      %s222 = sphi 0, %s219
      %s223 = sphi 0, %s222
      %s239 = sphi 0, %s223
    $region4: #{tpu_custom_call.1} parent=1 // loop_header_branch
      %19 = sbr.rel (%p17) target = $region8
    $region5: #{tpu_custom_call.1} parent=1 // loop_body
      %s21 = ssub.s32 %s16, 1
      %s22 = ssub.s32 %s16, 2
      %s32 = sadd.s32 1, %s25
      %p33 = scmp.ge.s32.totalorder %s32, 2
      %s34 = scalar_select %p33, 0, %s32
      %s35 = sadd.s32 1, %s24
      %s36 = scalar_select %p33, %s35, %s24
      %p37 = scmp.ge.s32.totalorder %s36, 4
      %s38 = scalar_select %p37, 0, %s36
      %s39 = sadd.s32 1, %s23
      %s40 = scalar_select %p37, %s39, %s23
      %p41 = scmp.ge.s32.totalorder %s40, 2
      %s42 = scalar_select %p41, 0, %s40
      %s43 = ssub.s32 %s23, %s42
      %p44 = scmp.eq.s32.totalorder %s43, 0
      %s46 = sadd.s32 %s45, 1
      %s47 = scalar_select %p44, %s45, %s46
      %p50 = pneg %p44
      %p51 = scmp.eq.s32.totalorder %s16, 15
      %p52 = por %p50, %p51
      %p53 = scmp.ne.s32.totalorder %s45, %s48
      %p54 = scmp.eq.s32.totalorder %s16, 0
      %p55 = por %p53, %p54
      %p56 = scmp.ne.s32.totalorder %s45, %s48
      %p57 = scmp.eq.s32.totalorder %s21, 15
      %p58 = por %p56, %p57
      %p59 = scmp.ne.s32.totalorder %s48, %s49
      %p60 = scmp.eq.s32.totalorder %s21, 0
      %p61 = por %p59, %p60
      %p62 = scmp.ne.s32.totalorder %s48, %s49
      %p63 = scmp.eq.s32.totalorder %s22, 15
      %p64 = por %p62, %p63
      %p66 = scmp.ne.s32.totalorder %s49, %s65
      %p67 = scmp.eq.s32.totalorder %s22, 0
      %p68 = por %p66, %p67
      %s69 = ssub.s32 %s23, %s42
      %s70 = ssub.s32 %s25, %s34
      %s71 = sor.u32 %s69, %s70
      %p72 = scmp.eq.s32.totalorder %s71, 0
      %s74 = sadd.s32 %s73, 1
      %s75 = scalar_select %p72, %s73, %s74
      %p78 = pneg %p72
      %p79 = scmp.eq.s32.totalorder %s16, 15
      %p80 = por %p78, %p79
      %p81 = scmp.ne.s32.totalorder %s73, %s76
      %p82 = scmp.eq.s32.totalorder %s16, 0
      %p83 = por %p81, %p82
      %p84 = scmp.ne.s32.totalorder %s73, %s76
      %p85 = scmp.eq.s32.totalorder %s21, 15
      %p86 = por %p84, %p85
      %p87 = scmp.ne.s32.totalorder %s76, %s77
      %p88 = scmp.eq.s32.totalorder %s21, 0
      %p89 = por %p87, %p88
      %p90 = scmp.ne.s32.totalorder %s76, %s77
      %p91 = scmp.eq.s32.totalorder %s22, 15
      %p92 = por %p90, %p91
      %p94 = scmp.ne.s32.totalorder %s77, %s93
      %p95 = scmp.eq.s32.totalorder %s22, 0
      %p96 = por %p94, %p95
      %s97 = ssub.s32 %s24, %s38
      %p98 = scmp.eq.s32.totalorder %s97, 0
      %s100 = sadd.s32 %s99, 1
      %s101 = scalar_select %p98, %s99, %s100
      %p104 = pneg %p98
      %p105 = scmp.eq.s32.totalorder %s16, 15
      %p106 = por %p104, %p105
      %p107 = scmp.ne.s32.totalorder %s99, %s102
      %p108 = scmp.eq.s32.totalorder %s16, 0
      %p109 = por %p107, %p108
      %p110 = scmp.ne.s32.totalorder %s99, %s102
      %p111 = scmp.eq.s32.totalorder %s21, 15
      %p112 = por %p110, %p111
      %p113 = scmp.ne.s32.totalorder %s102, %s103
      %p114 = scmp.eq.s32.totalorder %s21, 0
      %p115 = por %p113, %p114
      %p116 = scmp.ne.s32.totalorder %s102, %s103
      %p117 = scmp.eq.s32.totalorder %s22, 15
      %p118 = por %p116, %p117
      %p120 = scmp.ne.s32.totalorder %s103, %s119
      %p121 = scmp.eq.s32.totalorder %s22, 0
      %p122 = por %p120, %p121
      %s123 = ssub.s32 %s24, %s38
      %p124 = scmp.eq.s32.totalorder %s123, 0
      %s126 = sadd.s32 %s125, 1
      %s127 = scalar_select %p124, %s125, %s126
      %p130 = pneg %p124
      %p131 = scmp.eq.s32.totalorder %s16, 15
      %p132 = por %p130, %p131
      %p133 = scmp.ne.s32.totalorder %s125, %s128
      %p134 = scmp.eq.s32.totalorder %s16, 0
      %p135 = por %p133, %p134
      %p136 = scmp.ne.s32.totalorder %s125, %s128
      %p137 = scmp.eq.s32.totalorder %s21, 15
      %p138 = por %p136, %p137
      %p139 = scmp.ne.s32.totalorder %s128, %s129
      %p140 = scmp.eq.s32.totalorder %s21, 0
      %p141 = por %p139, %p140
      %p142 = scmp.ne.s32.totalorder %s128, %s129
      %p143 = scmp.eq.s32.totalorder %s22, 15
      %p144 = por %p142, %p143
      %p146 = scmp.ne.s32.totalorder %s129, %s145
      %p147 = scmp.eq.s32.totalorder %s22, 0
      %p148 = por %p146, %p147
      %s149 = ssub.s32 %s24, %s38
      %p150 = scmp.eq.s32.totalorder %s149, 0
      %s152 = sadd.s32 %s151, 1
      %s153 = scalar_select %p150, %s151, %s152
      %p156 = pneg %p150
      %p157 = scmp.eq.s32.totalorder %s16, 15
      %p158 = por %p156, %p157
      %p159 = scmp.ne.s32.totalorder %s151, %s154
      %p160 = scmp.eq.s32.totalorder %s16, 0
      %p161 = por %p159, %p160
      %p162 = scmp.ne.s32.totalorder %s151, %s154
      %p163 = scmp.eq.s32.totalorder %s21, 15
      %p164 = por %p162, %p163
      %p165 = scmp.ne.s32.totalorder %s154, %s155
      %p166 = scmp.eq.s32.totalorder %s21, 0
      %p167 = por %p165, %p166
      %p168 = scmp.ne.s32.totalorder %s154, %s155
      %p169 = scmp.eq.s32.totalorder %s22, 15
      %p170 = por %p168, %p169
      %p172 = scmp.ne.s32.totalorder %s155, %s171
      %p173 = scmp.eq.s32.totalorder %s22, 0
      %p174 = por %p172, %p173
      %s176 = sadd.s32 %s175, 1
      %p179 = scmp.eq.s32.totalorder %s16, 15
      %p180 = scmp.ne.s32.totalorder %s175, %s177
      %p181 = scmp.eq.s32.totalorder %s16, 0
      %p182 = por %p180, %p181
      %p183 = scmp.ne.s32.totalorder %s175, %s177
      %p184 = scmp.eq.s32.totalorder %s21, 15
      %p185 = por %p183, %p184
      %p186 = scmp.ne.s32.totalorder %s177, %s178
      %p187 = scmp.eq.s32.totalorder %s21, 0
      %p188 = por %p186, %p187
      %p189 = scmp.ne.s32.totalorder %s177, %s178
      %p190 = scmp.eq.s32.totalorder %s22, 15
      %p191 = por %p189, %p190
      %p193 = scmp.ne.s32.totalorder %s178, %s192
      %p194 = scmp.eq.s32.totalorder %s22, 0
      %p195 = por %p193, %p194
      %s197 = sadd.s32 %s196, 1
      %p200 = scmp.eq.s32.totalorder %s16, 15
      %p201 = scmp.ne.s32.totalorder %s196, %s198
      %p202 = scmp.eq.s32.totalorder %s16, 0
      %p203 = por %p201, %p202
      %p204 = scmp.ne.s32.totalorder %s196, %s198
      %p205 = scmp.eq.s32.totalorder %s21, 15
      %p206 = por %p204, %p205
      %p207 = scmp.ne.s32.totalorder %s198, %s199
      %p208 = scmp.eq.s32.totalorder %s21, 0
      %p209 = por %p207, %p208
      %p210 = scmp.ne.s32.totalorder %s198, %s199
      %p211 = scmp.eq.s32.totalorder %s22, 15
      %p212 = por %p210, %p211
      %p214 = scmp.ne.s32.totalorder %s199, %s213
      %p215 = scmp.eq.s32.totalorder %s22, 0
      %p216 = por %p214, %p215
      %s217 = ssub.s32 %s23, %s42
      %p218 = scmp.eq.s32.totalorder %s217, 0
      %s220 = sadd.s32 %s219, 1
      %s221 = scalar_select %p218, %s219, %s220
      %p224 = pneg %p218
      %p225 = scmp.eq.s32.totalorder %s16, 15
      %p226 = por %p224, %p225
      %p227 = scmp.ne.s32.totalorder %s219, %s222
      %p228 = scmp.eq.s32.totalorder %s16, 0
      %p229 = por %p227, %p228
      %p230 = scmp.ne.s32.totalorder %s219, %s222
      %p231 = scmp.eq.s32.totalorder %s21, 15
      %p232 = por %p230, %p231
      %p233 = scmp.ne.s32.totalorder %s222, %s223
      %p234 = scmp.eq.s32.totalorder %s21, 0
      %p235 = por %p233, %p234
      %p236 = scmp.ne.s32.totalorder %s222, %s223
      %p237 = scmp.eq.s32.totalorder %s22, 15
      %p238 = por %p236, %p237
      %p240 = scmp.ne.s32.totalorder %s223, %s239
      %p241 = scmp.eq.s32.totalorder %s22, 0
      %p242 = por %p240, %p241
      %p243 = scmp.le.s32.totalorder 1, %s16
      %p244 = scmp.lt.s32.totalorder %s16, 17
      %p245 = pnand %p243, %p244
      %p246 = pneg %p245
      // Predicated region
      $region9: #{tpu_custom_call.1} parent=5 // pred_check
        _
      $region10: #{tpu_custom_call.1} parent=5 // pred_check_branch
        %248 = sbr.rel (%p245) target = $region12
      $region11: #{tpu_custom_call.1} parent=5 // pred_region
        %s249 = ssub.s32 %s16, 1
        // Predicated region
        $region13: #{tpu_custom_call.1} parent=11 // pred_check
          %p250 = pneg %p188
        $region14: #{tpu_custom_call.1} parent=11 // pred_check_branch
          %252 = sbr.rel (%p250) target = $region16
        $region15: #{tpu_custom_call.1} parent=11 // pred_region
          _
        $region16: #{tpu_custom_call.1} parent=11 // pred_fallthru
          _
        // Predicated region
        $region17: #{tpu_custom_call.1} parent=11 // pred_check
          %p253 = pneg %p209
        $region18: #{tpu_custom_call.1} parent=11 // pred_check_branch
          %255 = sbr.rel (%p253) target = $region20
        $region19: #{tpu_custom_call.1} parent=11 // pred_region
          _
        $region20: #{tpu_custom_call.1} parent=11 // pred_fallthru
          _
      $region12: #{tpu_custom_call.1} parent=5 // pred_fallthru
        _
      %p256 = scmp.lt.s32.totalorder %s16, 16
      // Predicated region
      $region21: #{tpu_custom_call.1} parent=5 // pred_check
        %p257 = pneg %p256
      $region22: #{tpu_custom_call.1} parent=5 // pred_check_branch
        %259 = sbr.rel (%p257) target = $region24
      $region23: #{tpu_custom_call.1} parent=5 // pred_region
        // Predicated region
        $region25: #{tpu_custom_call.1} parent=23 // pred_check
          %p260 = pneg %p55
        $region26: #{tpu_custom_call.1} parent=23 // pred_check_branch
          %262 = sbr.rel (%p260) target = $region28
        $region27: #{tpu_custom_call.1} parent=23 // pred_region
          %p263 = scmp.lt.s32.totalorder %s23, 1
          %s264 = scalar_select %p263, %s23, 1
          %s265 = smul.addr %s264, 2
          %s266 = smul.addr %s265, 8
          %s267 = scalar_lea.vmem %s0, %s266
        $region28: #{tpu_custom_call.1} parent=23 // pred_fallthru
          _
        // Predicated region
        $region29: #{tpu_custom_call.1} parent=23 // pred_check
          %p268 = pneg %p83
        $region30: #{tpu_custom_call.1} parent=23 // pred_check_branch
          %270 = sbr.rel (%p268) target = $region32
        $region31: #{tpu_custom_call.1} parent=23 // pred_region
          %p271 = scmp.lt.s32.totalorder %s23, 1
          %s272 = scalar_select %p271, %s23, 1
          %p273 = scmp.lt.s32.totalorder %s25, 1
          %s274 = scalar_select %p273, %s25, 1
          %s275 = smul.addr %s272, 2
          %s276 = sadd.s32 %s274, %s275
          %s277 = smul.addr %s276, 8
          %s278 = scalar_lea.vmem %s1, %s277
        $region32: #{tpu_custom_call.1} parent=23 // pred_fallthru
          _
        // Predicated region
        $region33: #{tpu_custom_call.1} parent=23 // pred_check
          %p279 = pneg %p109
        $region34: #{tpu_custom_call.1} parent=23 // pred_check_branch
          %281 = sbr.rel (%p279) target = $region36
        $region35: #{tpu_custom_call.1} parent=23 // pred_region
          %p282 = scmp.lt.s32.totalorder %s24, 3
          %s283 = scalar_select %p282, %s24, 3
          %s284 = smul.addr %s283, 8
          %s285 = smul.addr %s284, 8
          %s286 = scalar_lea.vmem %s2, %s285
        $region36: #{tpu_custom_call.1} parent=23 // pred_fallthru
          _
        // Predicated region
        $region37: #{tpu_custom_call.1} parent=23 // pred_check
          %p287 = pneg %p135
        $region38: #{tpu_custom_call.1} parent=23 // pred_check_branch
          %289 = sbr.rel (%p287) target = $region40
        $region39: #{tpu_custom_call.1} parent=23 // pred_region
          %p290 = scmp.lt.s32.totalorder %s24, 3
          %s291 = scalar_select %p290, %s24, 3
          %s292 = smul.addr %s291, 8
          %s293 = smul.addr %s292, 8
          %s294 = scalar_lea.vmem %s3, %s293
        $region40: #{tpu_custom_call.1} parent=23 // pred_fallthru
          _
        // Predicated region
        $region41: #{tpu_custom_call.1} parent=23 // pred_check
          %p295 = pneg %p161
        $region42: #{tpu_custom_call.1} parent=23 // pred_check_branch
          %297 = sbr.rel (%p295) target = $region44
        $region43: #{tpu_custom_call.1} parent=23 // pred_region
          %p298 = scmp.lt.s32.totalorder %s24, 3
          %s299 = scalar_select %p298, %s24, 3
          %s300 = smul.addr %s299, 2
          %s301 = smul.addr %s300, 8
          %s302 = scalar_lea.vmem %s4, %s301
        $region44: #{tpu_custom_call.1} parent=23 // pred_fallthru
          _
      $region24: #{tpu_custom_call.1} parent=5 // pred_fallthru
        _
      %p303 = scmp.le.s32.totalorder 1, %s16
      %p304 = scmp.lt.s32.totalorder %s16, 17
      %p305 = pnand %p303, %p304
      %p306 = pneg %p305
      // Predicated region
      $region45: #{tpu_custom_call.1} parent=5 // pred_check
        _
      $region46: #{tpu_custom_call.1} parent=5 // pred_check_branch
        %308 = sbr.rel (%p305) target = $region48
      $region47: #{tpu_custom_call.1} parent=5 // pred_region
        %s309 = ssub.s32 %s16, 1
        %p310 = scmp.lt.s32.totalorder %s26, 1
        %s311 = scalar_select %p310, %s26, 1
        %s312 = smul.addr %s311, 2
        %s313 = smul.addr %s312, 8
        %s314 = scalar_lea.vmem %s0, %s313
        %p315 = pneg %p61
        %p316 = pneg %p58
        %p317 = scmp.lt.s32.totalorder %s26, 1
        %s318 = scalar_select %p317, %s26, 1
        %p319 = scmp.lt.s32.totalorder %s28, 1
        %s320 = scalar_select %p319, %s28, 1
        %s321 = smul.addr %s318, 2
        %s322 = sadd.s32 %s320, %s321
        %s323 = smul.addr %s322, 8
        %s324 = scalar_lea.vmem %s1, %s323
        %p325 = pneg %p89
        %p326 = pneg %p86
        %p327 = scmp.lt.s32.totalorder %s27, 3
        %s328 = scalar_select %p327, %s27, 3
        %s329 = smul.addr %s328, 8
        %s330 = smul.addr %s329, 8
        %s331 = scalar_lea.vmem %s2, %s330
        %p332 = pneg %p115
        %p333 = pneg %p112
        %p334 = scmp.lt.s32.totalorder %s27, 3
        %s335 = scalar_select %p334, %s27, 3
        %s336 = smul.addr %s335, 8
        %s337 = smul.addr %s336, 8
        %s338 = scalar_lea.vmem %s3, %s337
        %p339 = pneg %p141
        %p340 = pneg %p138
        %p341 = scmp.lt.s32.totalorder %s27, 3
        %s342 = scalar_select %p341, %s27, 3
        %s343 = smul.addr %s342, 2
        %s344 = smul.addr %s343, 8
        %s345 = scalar_lea.vmem %s4, %s344
        %p346 = pneg %p167
        %p347 = pneg %p164
        %p348 = pneg %p188
        %p349 = pneg %p185
        %p350 = pneg %p209
        %p351 = pneg %p206
        %p352 = pneg %p235
        %p353 = pneg %p232
        %s354 = sand.u32 %s222, 1
        %s355 = scalar_lea.sflag [#allocation8], %s354
        %s356 = sand.u32 %s222, 1
        %s357 = smul.addr %s356, 16
        %s358 = scalar_lea.vmem [#allocation7], %s357
        %p359 = scmp.lt.s32.totalorder %s26, 1
        %s360 = scalar_select %p359, %s26, 1
        %s361 = smul.addr %s360, 2
        %s362 = smul.addr %s361, 8
        %s363 = scalar_lea.vmem %s0, %s362
        %p364 = scmp.lt.s32.totalorder %s26, 1
        %s365 = scalar_select %p364, %s26, 1
        %p366 = scmp.lt.s32.totalorder %s28, 1
        %s367 = scalar_select %p366, %s28, 1
        %s368 = smul.addr %s365, 2
        %s369 = sadd.s32 %s367, %s368
        %s370 = smul.addr %s369, 8
        %s371 = scalar_lea.vmem %s1, %s370
        %p372 = scmp.lt.s32.totalorder %s27, 3
        %s373 = scalar_select %p372, %s27, 3
        %s374 = smul.addr %s373, 8
        %s375 = smul.addr %s374, 8
        %s376 = scalar_lea.vmem %s2, %s375
        %p377 = scmp.lt.s32.totalorder %s27, 3
        %s378 = scalar_select %p377, %s27, 3
        %s379 = smul.addr %s378, 8
        %s380 = smul.addr %s379, 8
        %s381 = scalar_lea.vmem %s3, %s380
        %p382 = scmp.lt.s32.totalorder %s27, 3
        %s383 = scalar_select %p382, %s27, 3
        %s384 = smul.addr %s383, 2
        %s385 = smul.addr %s384, 8
        %s386 = scalar_lea.vmem %s4, %s385
        %p387 = scmp.eq.s32.totalorder %s27, 0
        %p388 = scmp.eq.s32.totalorder %s28, 0
        %p389 = pnand %p387, %p388
        %p390 = pneg %p389
        // Predicated region
        $region49: #{tpu_custom_call.1} parent=47 // pred_check
          _
        $region50: #{tpu_custom_call.1} parent=47 // pred_check_branch
          %392 = sbr.rel (%p389) target = $region52
        $region51: #{tpu_custom_call.1} parent=47 // pred_region
          %vm393 = vcmask 523264
          %394 = vst.msk [vmem:[#allocation6] sm:$0xff] %vm393, 0.0
          %395 = vst.msk [vmem:[#allocation6 + $0x8] sm:$0xff] %vm393, 0.0
        $region52: #{tpu_custom_call.1} parent=47 // pred_fallthru
          _
        // Predicated region
        $region53: #{tpu_custom_call.1} parent=47 // pred_check
          %p396 = pneg %p388
        $region54: #{tpu_custom_call.1} parent=47 // pred_check_branch
          %398 = sbr.rel (%p396) target = $region56
        $region55: #{tpu_custom_call.1} parent=47 // pred_region
          %v399 = vld [vmem:[%s363] sm:$0xff]
          %v400 = vld [vmem:[%s363 + $0x8] sm:$0xff]
          %v401 = vld [vmem:[%s376] sm:$0xff]
          %v402 = vld [vmem:[%s376 + $0x8] sm:$0xff]
          %v403 = vld [vmem:[%s376 + $0x10] sm:$0xff]
          %v404 = vld [vmem:[%s376 + $0x18] sm:$0xff]
          %v405 = vld [vmem:[%s376 + $0x20] sm:$0xff]
          %v406 = vld [vmem:[%s376 + $0x28] sm:$0xff]
          %v407 = vld [vmem:[%s376 + $0x30] sm:$0xff]
          %v408 = vld [vmem:[%s376 + $0x38] sm:$0xff]
          %vm409 = vcmask 523264
          %v411 = vsel %vm409, %v399, 0
          %v414 = vsel %vm409, %v400, 0
          %416 = vmatprep.subr.mxu0 0.0
          %417 = vmatpush1.msra.mxu0 %v401
          %418 = vmatprep.subr.mxu0 0.0
          %419 = vmatpush1.msra.mxu0 %v402
          %420 = vmatprep.subr.mxu0 0.0
          %421 = vmatpush1.msra.mxu0 %v403
          %422 = vmatprep.subr.mxu0 0.0
          %423 = vmatpush1.msra.mxu0 %v404
          %424 = vmatprep.subr.mxu0 0.0
          %425 = vmatpush1.msra.mxu0 %v405
          %426 = vmatprep.subr.mxu0 0.0
          %427 = vmatpush1.msra.mxu0 %v406
          %428 = vmatprep.subr.mxu0 0.0
          %429 = vmatpush1.msra.mxu0 %v407
          %430 = vmatprep.subr.mxu0 0.0
          %431 = vmatpush1.msra.mxu0 %v408
          %432 = vmatprep.subr.mxu0 0.0
          %433 = vmatpush1.msra.mxu0 0.0
          %434 = vmatprep.subr.mxu0 0.0
          %435 = vmatpush1.msra.mxu0 0.0
          %436 = vmatprep.subr.mxu0 0.0
          %437 = vmatpush1.msra.mxu0 0.0
          %438 = vmatprep.subr.mxu0 0.0
          %439 = vmatpush1.msra.mxu0 0.0
          %440 = vmatprep.subr.mxu0 0.0
          %441 = vmatpush1.msra.mxu0 0.0
          %442 = vmatprep.subr.mxu0 0.0
          %443 = vmatpush1.msra.mxu0 0.0
          %444 = vmatprep.subr.mxu0 0.0
          %445 = vmatpush1.msra.mxu0 0.0
          %446 = vmatprep.subr.mxu0 0.0
          %447 = vmatpush1.msra.mxu0 0.0
          %448 = vmatprep.subr.mxu0 0.0
          %449 = vmatpush1.msra.mxu0 0.0
          %450 = vmatprep.subr.mxu0 0.0
          %451 = vmatpush1.msra.mxu0 0.0
          %452 = vmatprep.subr.mxu0 0.0
          %453 = vmatpush1.msra.mxu0 0.0
          %454 = vmatprep.subr.mxu0 0.0
          %455 = vmatpush1.msra.mxu0 0.0
          %456 = vmatprep.subr.mxu0 0.0
          %457 = vmatpush1.msra.mxu0 0.0
          %458 = vmatprep.subr.mxu0 0.0
          %459 = vmatpush1.msra.mxu0 0.0
          %460 = vmatprep.subr.mxu0 0.0
          %461 = vmatpush1.msra.mxu0 0.0
          %462 = vmatprep.subr.mxu0 0.0
          %463 = vmatpush1.msra.mxu0 0.0
          %464 = vmatprep.subr.mxu0 0.0
          %465 = vmatpush1.msra.mxu0 0.0
          %466 = vmatprep.subr.mxu0 0.0
          %467 = vmatpush1.msra.mxu0 0.0
          %468 = vmatprep.subr.mxu0 0.0
          %469 = vmatpush1.msra.mxu0 0.0
          %470 = vmatprep.subr.mxu0 0.0
          %471 = vmatpush1.msra.mxu0 0.0
          %472 = vmatprep.subr.mxu0 0.0
          %473 = vmatpush1.msra.mxu0 0.0
          %474 = vmatprep.subr.mxu0 0.0
          %475 = vmatpush1.msra.mxu0 0.0
          %476 = vmatprep.subr.mxu0 0.0
          %477 = vmatpush1.msra.mxu0 0.0
          %478 = vmatprep.subr.mxu0 0.0
          %479 = vmatpush1.msra.mxu0 0.0
          %480 = vmatprep.mubr.f32.mxu0 0.0
          %481 = vmatmul.mubr.f32.gmra.mrb[0].mxu0 %v411
          %v482 = vpop.f32.mrb[0].mxu0
          %v483 = vadd.f32 0.0, %v482
          %v484 = vpop.f32.mrb[0].mxu0
          %485 = vmatprep.mubr.f32.mxu0 0.0
          %486 = vmatmul.mubr.f32.gmra.mrb[0].mxu0 %v414
          %v487 = vpop.f32.mrb[0].mxu0
          %v488 = vadd.f32 0.0, %v487
          %v489 = vpop.f32.mrb[0].mxu0
          %490 = vdwg.mxu0
          %v491 = vmul.f32 %v483, 0.25
          %v492 = vmul.f32 %v488, 0.25
          %v493 = vld [vmem:[%s5] sm:$0xff]
          %v494 = vld [vmem:[%s5 + $0x8] sm:$0xff]
          %v495 = vld [vmem:[%s6] sm:$0xff]
          %v496 = vld [vmem:[%s6 + $0x8] sm:$0xff]
          %v497 = vmul.f32 %v491, %v493
          %v498 = vmul.f32 %v492, %v494
          %v499 = vsub.f32 0.0, %v491
          %v500 = vsub.f32 0.0, %v492
          %503 = vrot.lane.b32.xlu0 %v499, 120
          %v504 = vpop.permute.xlu0 %503
          %505 = vrot.lane.b32.xlu0 %v500, 120
          %v506 = vpop.permute.xlu0 %505
          %511 = vrot.lane.b32.xlu0 %v491, 8
          %v512 = vpop.permute.xlu0 %511
          %513 = vrot.lane.b32.xlu0 %v492, 8
          %v514 = vpop.permute.xlu0 %513
          %vm517 = vcmask 64512
          %v518 = vsel %vm517, %v504, %v512
          %v519 = vsel %vm517, %v506, %v514
          %v520 = vmul.f32 %v518, %v495
          %v521 = vmul.f32 %v519, %v496
          %v522 = vadd.f32 %v497, %v520
          %v523 = vadd.f32 %v498, %v521
          %vm524 = vcmask 130048
          %525 = vst.msk [vmem:[#allocation2] sm:$0xff] %vm524, %v522
          %526 = vst.msk [vmem:[#allocation2 + $0x8] sm:$0xff] %vm524, %v523
          %vm527 = vcmask 7168
          %528 = vst.msk [vmem:[#allocation3] sm:$0xff] %vm527, -inf
          %529 = vst.msk [vmem:[#allocation3 + $0x8] sm:$0xff] %vm527, -inf
          %530 = vst.msk [vmem:[#allocation4] sm:$0xff] %vm527, 0.0
          %531 = vst.msk [vmem:[#allocation4 + $0x8] sm:$0xff] %vm527, 0.0
          %532 = vst.msk [vmem:[#allocation5] sm:$0xff] %vm524, 0.0
          %533 = vst.msk [vmem:[#allocation5 + $0x8] sm:$0xff] %vm524, 0.0
        $region56: #{tpu_custom_call.1} parent=47 // pred_fallthru
          _
        %v534 = vld [vmem:[%s371] sm:$0xff]
        %v535 = vld [vmem:[%s381] sm:$0xff]
        %v536 = vld [vmem:[%s381 + $0x8] sm:$0xff]
        %v537 = vld [vmem:[%s381 + $0x10] sm:$0xff]
        %v538 = vld [vmem:[%s381 + $0x18] sm:$0xff]
        %v539 = vld [vmem:[%s381 + $0x20] sm:$0xff]
        %v540 = vld [vmem:[%s381 + $0x28] sm:$0xff]
        %v541 = vld [vmem:[%s381 + $0x30] sm:$0xff]
        %v542 = vld [vmem:[%s381 + $0x38] sm:$0xff]
        %vm543 = vcmask 523264
        %v545 = vsel %vm543, %v534, 0
        %547 = vmatprep.subr.mxu0 0.0
        %548 = vmatpush1.msra.mxu0 %v535
        %549 = vmatprep.subr.mxu0 0.0
        %550 = vmatpush1.msra.mxu0 %v536
        %551 = vmatprep.subr.mxu0 0.0
        %552 = vmatpush1.msra.mxu0 %v537
        %553 = vmatprep.subr.mxu0 0.0
        %554 = vmatpush1.msra.mxu0 %v538
        %555 = vmatprep.subr.mxu0 0.0
        %556 = vmatpush1.msra.mxu0 %v539
        %557 = vmatprep.subr.mxu0 0.0
        %558 = vmatpush1.msra.mxu0 %v540
        %559 = vmatprep.subr.mxu0 0.0
        %560 = vmatpush1.msra.mxu0 %v541
        %561 = vmatprep.subr.mxu0 0.0
        %562 = vmatpush1.msra.mxu0 %v542
        %563 = vmatprep.subr.mxu0 0.0
        %564 = vmatpush1.msra.mxu0 0.0
        %565 = vmatprep.subr.mxu0 0.0
        %566 = vmatpush1.msra.mxu0 0.0
        %567 = vmatprep.subr.mxu0 0.0
        %568 = vmatpush1.msra.mxu0 0.0
        %569 = vmatprep.subr.mxu0 0.0
        %570 = vmatpush1.msra.mxu0 0.0
        %571 = vmatprep.subr.mxu0 0.0
        %572 = vmatpush1.msra.mxu0 0.0
        %573 = vmatprep.subr.mxu0 0.0
        %574 = vmatpush1.msra.mxu0 0.0
        %575 = vmatprep.subr.mxu0 0.0
        %576 = vmatpush1.msra.mxu0 0.0
        %577 = vmatprep.subr.mxu0 0.0
        %578 = vmatpush1.msra.mxu0 0.0
        %579 = vmatprep.subr.mxu0 0.0
        %580 = vmatpush1.msra.mxu0 0.0
        %581 = vmatprep.subr.mxu0 0.0
        %582 = vmatpush1.msra.mxu0 0.0
        %583 = vmatprep.subr.mxu0 0.0
        %584 = vmatpush1.msra.mxu0 0.0
        %585 = vmatprep.subr.mxu0 0.0
        %586 = vmatpush1.msra.mxu0 0.0
        %587 = vmatprep.subr.mxu0 0.0
        %588 = vmatpush1.msra.mxu0 0.0
        %589 = vmatprep.subr.mxu0 0.0
        %590 = vmatpush1.msra.mxu0 0.0
        %591 = vmatprep.subr.mxu0 0.0
        %592 = vmatpush1.msra.mxu0 0.0
        %593 = vmatprep.subr.mxu0 0.0
        %594 = vmatpush1.msra.mxu0 0.0
        %595 = vmatprep.subr.mxu0 0.0
        %596 = vmatpush1.msra.mxu0 0.0
        %597 = vmatprep.subr.mxu0 0.0
        %598 = vmatpush1.msra.mxu0 0.0
        %599 = vmatprep.subr.mxu0 0.0
        %600 = vmatpush1.msra.mxu0 0.0
        %601 = vmatprep.subr.mxu0 0.0
        %602 = vmatpush1.msra.mxu0 0.0
        %603 = vmatprep.subr.mxu0 0.0
        %604 = vmatpush1.msra.mxu0 0.0
        %605 = vmatprep.subr.mxu0 0.0
        %606 = vmatpush1.msra.mxu0 0.0
        %607 = vmatprep.subr.mxu0 0.0
        %608 = vmatpush1.msra.mxu0 0.0
        %609 = vmatprep.subr.mxu0 0.0
        %610 = vmatpush1.msra.mxu0 0.0
        %611 = vmatprep.mubr.f32.mxu0 0.0
        %612 = vmatmul.mubr.f32.gmra.mrb[0].mxu0 %v545
        %v613 = vpop.f32.mrb[0].mxu0
        %v614 = vadd.f32 0.0, %v613
        %v615 = vpop.f32.mrb[0].mxu0
        %616 = vdwg.mxu0
        %s617 = smul.u32 %s28, 8
        %s618 = scalar_lea.vmem %s5, %s617
        %v619 = vld [vmem:[%s618] sm:$0xff]
        %s620 = scalar_lea.vmem %s6, %s617
        %v621 = vld [vmem:[%s620] sm:$0xff]
        %v622 = vmul.f32 %v614, %v619
        %v623 = vsub.f32 0.0, %v614
        %625 = vrot.lane.b32.xlu0 %v623, 120
        %v626 = vpop.permute.xlu0 %625
        %629 = vrot.lane.b32.xlu0 %v614, 8
        %v630 = vpop.permute.xlu0 %629
        %vm632 = vcmask 64512
        %v633 = vsel %vm632, %v626, %v630
        %v634 = vmul.f32 %v633, %v621
        %v635 = vadd.f32 %v622, %v634
        %v636 = vld [vmem:[#allocation2] sm:$0xff]
        %v637 = vld [vmem:[#allocation2 + $0x8] sm:$0xff]
        %vm638 = vcmask 130048
        %v640 = vsel %vm638, %v636, 0
        %v643 = vsel %vm638, %v637, 0
        %v646 = vsel %vm638, %v635, 0
        %648 = vmatprep.subr.mxu0 0.0
        %649 = vmatpush1.xpose.msra.mxu0 %v646
        %650 = vmatprep.subr.mxu0 0.0
        %651 = vmatpush1.xpose.msra.mxu0 0.0
        %652 = vmatprep.subr.mxu0 0.0
        %653 = vmatpush1.xpose.msra.mxu0 0.0
        %654 = vmatprep.subr.mxu0 0.0
        %655 = vmatpush1.xpose.msra.mxu0 0.0
        %656 = vmatprep.subr.mxu0 0.0
        %657 = vmatpush1.xpose.msra.mxu0 0.0
        %658 = vmatprep.subr.mxu0 0.0
        %659 = vmatpush1.xpose.msra.mxu0 0.0
        %660 = vmatprep.subr.mxu0 0.0
        %661 = vmatpush1.xpose.msra.mxu0 0.0
        %662 = vmatprep.subr.mxu0 0.0
        %663 = vmatpush1.xpose.msra.mxu0 0.0
        %664 = vmatprep.subr.mxu0 0.0
        %665 = vmatpush1.xpose.msra.mxu0 0.0
        %666 = vmatprep.subr.mxu0 0.0
        %667 = vmatpush1.xpose.msra.mxu0 0.0
        %668 = vmatprep.subr.mxu0 0.0
        %669 = vmatpush1.xpose.msra.mxu0 0.0
        %670 = vmatprep.subr.mxu0 0.0
        %671 = vmatpush1.xpose.msra.mxu0 0.0
        %672 = vmatprep.subr.mxu0 0.0
        %673 = vmatpush1.xpose.msra.mxu0 0.0
        %674 = vmatprep.subr.mxu0 0.0
        %675 = vmatpush1.xpose.msra.mxu0 0.0
        %676 = vmatprep.subr.mxu0 0.0
        %677 = vmatpush1.xpose.msra.mxu0 0.0
        %678 = vmatprep.subr.mxu0 0.0
        %679 = vmatpush1.xpose.msra.mxu0 0.0
        %680 = vmatprep.subr.mxu0 0.0
        %681 = vmatpush1.xpose.msra.mxu0 0.0
        %682 = vmatprep.subr.mxu0 0.0
        %683 = vmatpush1.xpose.msra.mxu0 0.0
        %684 = vmatprep.subr.mxu0 0.0
        %685 = vmatpush1.xpose.msra.mxu0 0.0
        %686 = vmatprep.subr.mxu0 0.0
        %687 = vmatpush1.xpose.msra.mxu0 0.0
        %688 = vmatprep.subr.mxu0 0.0
        %689 = vmatpush1.xpose.msra.mxu0 0.0
        %690 = vmatprep.subr.mxu0 0.0
        %691 = vmatpush1.xpose.msra.mxu0 0.0
        %692 = vmatprep.subr.mxu0 0.0
        %693 = vmatpush1.xpose.msra.mxu0 0.0
        %694 = vmatprep.subr.mxu0 0.0
        %695 = vmatpush1.xpose.msra.mxu0 0.0
        %696 = vmatprep.subr.mxu0 0.0
        %697 = vmatpush1.xpose.msra.mxu0 0.0
        %698 = vmatprep.subr.mxu0 0.0
        %699 = vmatpush1.xpose.msra.mxu0 0.0
        %700 = vmatprep.subr.mxu0 0.0
        %701 = vmatpush1.xpose.msra.mxu0 0.0
        %702 = vmatprep.subr.mxu0 0.0
        %703 = vmatpush1.xpose.msra.mxu0 0.0
        %704 = vmatprep.subr.mxu0 0.0
        %705 = vmatpush1.xpose.msra.mxu0 0.0
        %706 = vmatprep.subr.mxu0 0.0
        %707 = vmatpush1.xpose.msra.mxu0 0.0
        %708 = vmatprep.subr.mxu0 0.0
        %709 = vmatpush1.xpose.msra.mxu0 0.0
        %710 = vmatprep.subr.mxu0 0.0
        %711 = vmatpush1.xpose.msra.mxu0 0.0
        %712 = vmatprep.mubr.f32.mxu0 0.0
        %713 = vmatmul.mubr.f32.gmra.mrb[0].mxu0 %v640
        %v714 = vpop.f32.mrb[0].mxu0
        %v715 = vadd.f32 0.0, %v714
        %v716 = vpop.f32.mrb[0].mxu0
        %717 = vmatprep.mubr.f32.mxu0 0.0
        %718 = vmatmul.mubr.f32.gmra.mrb[0].mxu0 %v643
        %v719 = vpop.f32.mrb[0].mxu0
        %v720 = vadd.f32 0.0, %v719
        %v721 = vpop.f32.mrb[0].mxu0
        %722 = vdwg.mxu0
        %v723 = vld [vmem:[#allocation3] sm:$0xff]
        %v724 = vld [vmem:[#allocation3 + $0x8] sm:$0xff]
        %v725 = vsel %vm632, %v715, -inf
        %726 = vmax.xlane.f32.xlu0 %v725
        %v727 = vpop.xlane.xlu0 %726
        %v728 = vsel %vm632, %v720, -inf
        %729 = vmax.xlane.f32.xlu0 %v728
        %v730 = vpop.xlane.xlu0 %729
        %v731 = vmax.f32 %v723, %v727
        %v732 = vmax.f32 %v724, %v730
        %v733 = vsub.f32 %v723, %v731
        %v734 = vsub.f32 %v724, %v732
        %v735 = vmul.f32 %v733, 1.442695
        %v736 = vpow.pop %v735
        %v737 = vmul.f32 %v734, 1.442695
        %v738 = vpow.pop %v737
        %740 = vset.pattern.permute.xlu0 0
        %741 = vperm.xlu0 %740, %v731
        %v742 = vpop.permute.xlu0 %741
        %745 = vset.pattern.permute.xlu0 0
        %746 = vperm.xlu0 %745, %v732
        %v747 = vpop.permute.xlu0 %746
        %v749 = vsub.f32 %v715, %v742
        %v750 = vsub.f32 %v720, %v747
        %v751 = vmul.f32 %v749, 1.442695
        %v752 = vpow.pop %v751
        %v753 = vmul.f32 %v750, 1.442695
        %v754 = vpow.pop %v753
        %v755 = vld [vmem:[#allocation4] sm:$0xff]
        %v756 = vld [vmem:[#allocation4 + $0x8] sm:$0xff]
        %v757 = vmul.f32 %v736, %v755
        %v758 = vmul.f32 %v738, %v756
        %v759 = vsel %vm632, %v752, 0.0
        %760 = vadd.xlane.f32.xlu0 %v759
        %v761 = vpop.xlane.xlu0 %760
        %v762 = vsel %vm632, %v754, 0.0
        %763 = vadd.xlane.f32.xlu0 %v762
        %v764 = vpop.xlane.xlu0 %763
        %v765 = vadd.f32 %v757, %v761
        %v766 = vadd.f32 %v758, %v764
        %vm767 = vcmask 7168
        %768 = vst.msk [vmem:[#allocation4] sm:$0xff] %vm767, %v765
        %769 = vst.msk [vmem:[#allocation4 + $0x8] sm:$0xff] %vm767, %v766
        %v770 = vld [vmem:[#allocation5] sm:$0xff]
        %v771 = vld [vmem:[#allocation5 + $0x8] sm:$0xff]
        %773 = vset.pattern.permute.xlu0 0
        %774 = vperm.xlu0 %773, %v736
        %v775 = vpop.permute.xlu0 %774
        %778 = vset.pattern.permute.xlu0 0
        %779 = vperm.xlu0 %778, %v738
        %v780 = vpop.permute.xlu0 %779
        %v782 = vmul.f32 %v775, %v770
        %v783 = vmul.f32 %v780, %v771
        %784 = vrot.lane.b32.xlu0 %v614, 112
        %v785 = vpop.permute.xlu0 %784
        %v788 = vsel %vm632, %v752, 0
        %v791 = vsel %vm632, %v754, 0
        %793 = vmatprep.subr.mxu0 0.0
        %794 = vmatpush1.msra.mxu0 %v785
        %795 = vmatprep.subr.mxu0 0.0
        %796 = vmatpush1.msra.mxu0 0.0
        %797 = vmatprep.subr.mxu0 0.0
        %798 = vmatpush1.msra.mxu0 0.0
        %799 = vmatprep.subr.mxu0 0.0
        %800 = vmatpush1.msra.mxu0 0.0
        %801 = vmatprep.subr.mxu0 0.0
        %802 = vmatpush1.msra.mxu0 0.0
        %803 = vmatprep.subr.mxu0 0.0
        %804 = vmatpush1.msra.mxu0 0.0
        %805 = vmatprep.subr.mxu0 0.0
        %806 = vmatpush1.msra.mxu0 0.0
        %807 = vmatprep.subr.mxu0 0.0
        %808 = vmatpush1.msra.mxu0 0.0
        %809 = vmatprep.subr.mxu0 0.0
        %810 = vmatpush1.msra.mxu0 0.0
        %811 = vmatprep.subr.mxu0 0.0
        %812 = vmatpush1.msra.mxu0 0.0
        %813 = vmatprep.subr.mxu0 0.0
        %814 = vmatpush1.msra.mxu0 0.0
        %815 = vmatprep.subr.mxu0 0.0
        %816 = vmatpush1.msra.mxu0 0.0
        %817 = vmatprep.subr.mxu0 0.0
        %818 = vmatpush1.msra.mxu0 0.0
        %819 = vmatprep.subr.mxu0 0.0
        %820 = vmatpush1.msra.mxu0 0.0
        %821 = vmatprep.subr.mxu0 0.0
        %822 = vmatpush1.msra.mxu0 0.0
        %823 = vmatprep.subr.mxu0 0.0
        %824 = vmatpush1.msra.mxu0 0.0
        %825 = vmatprep.subr.mxu0 0.0
        %826 = vmatpush1.msra.mxu0 0.0
        %827 = vmatprep.subr.mxu0 0.0
        %828 = vmatpush1.msra.mxu0 0.0
        %829 = vmatprep.subr.mxu0 0.0
        %830 = vmatpush1.msra.mxu0 0.0
        %831 = vmatprep.subr.mxu0 0.0
        %832 = vmatpush1.msra.mxu0 0.0
        %833 = vmatprep.subr.mxu0 0.0
        %834 = vmatpush1.msra.mxu0 0.0
        %835 = vmatprep.subr.mxu0 0.0
        %836 = vmatpush1.msra.mxu0 0.0
        %837 = vmatprep.subr.mxu0 0.0
        %838 = vmatpush1.msra.mxu0 0.0
        %839 = vmatprep.subr.mxu0 0.0
        %840 = vmatpush1.msra.mxu0 0.0
        %841 = vmatprep.subr.mxu0 0.0
        %842 = vmatpush1.msra.mxu0 0.0
        %843 = vmatprep.subr.mxu0 0.0
        %844 = vmatpush1.msra.mxu0 0.0
        %845 = vmatprep.subr.mxu0 0.0
        %846 = vmatpush1.msra.mxu0 0.0
        %847 = vmatprep.subr.mxu0 0.0
        %848 = vmatpush1.msra.mxu0 0.0
        %849 = vmatprep.subr.mxu0 0.0
        %850 = vmatpush1.msra.mxu0 0.0
        %851 = vmatprep.subr.mxu0 0.0
        %852 = vmatpush1.msra.mxu0 0.0
        %853 = vmatprep.subr.mxu0 0.0
        %854 = vmatpush1.msra.mxu0 0.0
        %855 = vmatprep.subr.mxu0 0.0
        %856 = vmatpush1.msra.mxu0 0.0
        %857 = vmatprep.mubr.f32.mxu0 0.0
        %858 = vmatmul.mubr.f32.gmra.mrb[0].mxu0 %v788
        %v859 = vpop.f32.mrb[0].mxu0
        %v860 = vadd.f32 0.0, %v859
        %v861 = vpop.f32.mrb[0].mxu0
        %862 = vmatprep.mubr.f32.mxu0 0.0
        %863 = vmatmul.mubr.f32.gmra.mrb[0].mxu0 %v791
        %v864 = vpop.f32.mrb[0].mxu0
        %v865 = vadd.f32 0.0, %v864
        %v866 = vpop.f32.mrb[0].mxu0
        %867 = vdwg.mxu0
        %v868 = vadd.f32 %v782, %v860
        %v869 = vadd.f32 %v783, %v865
        %870 = vst.msk [vmem:[#allocation5] sm:$0xff] %vm638, %v868
        %871 = vst.msk [vmem:[#allocation5 + $0x8] sm:$0xff] %vm638, %v869
        %872 = vst.msk [vmem:[#allocation3] sm:$0xff] %vm767, %v731
        %873 = vst.msk [vmem:[#allocation3 + $0x8] sm:$0xff] %vm767, %v732
        %p874 = scmp.eq.s32.totalorder %s28, 1
        // Predicated region
        $region57: #{tpu_custom_call.1} parent=47 // pred_check
          %p875 = pneg %p874
        $region58: #{tpu_custom_call.1} parent=47 // pred_check_branch
          %877 = sbr.rel (%p875) target = $region60
        $region59: #{tpu_custom_call.1} parent=47 // pred_region
          %v878 = vld [vmem:[#allocation5] sm:$0xff]
          %v879 = vld [vmem:[#allocation5 + $0x8] sm:$0xff]
          %v880 = vld [vmem:[#allocation4] sm:$0xff]
          %v881 = vld [vmem:[#allocation4 + $0x8] sm:$0xff]
          %v882 = vrcp.pop %v880
          %v883 = vrcp.pop %v881
          %885 = vset.pattern.permute.xlu0 0
          %886 = vperm.xlu0 %885, %v882
          %v887 = vpop.permute.xlu0 %886
          %890 = vset.pattern.permute.xlu0 0
          %891 = vperm.xlu0 %890, %v883
          %v892 = vpop.permute.xlu0 %891
          %v894 = vmul.f32 %v878, %v887
          %v895 = vmul.f32 %v879, %v892
          %v896 = vld [vmem:[#allocation6] sm:$0xff]
          %v897 = vld [vmem:[#allocation6 + $0x8] sm:$0xff]
          %v898 = vld [vmem:[%s386] sm:$0xff]
          %v899 = vld [vmem:[%s386 + $0x8] sm:$0xff]
          %v901 = vsel %vm638, %v894, 0
          %v904 = vsel %vm638, %v895, 0
          %906 = vmatprep.subr.mxu0 0.0
          %907 = vmatpush1.msra.mxu0 %v898
          %908 = vmatprep.subr.mxu0 0.0
          %909 = vmatpush1.msra.mxu0 %v899
          %910 = vmatprep.subr.mxu0 0.0
          %911 = vmatpush1.msra.mxu0 0.0
          %912 = vmatprep.subr.mxu0 0.0
          %913 = vmatpush1.msra.mxu0 0.0
          %914 = vmatprep.subr.mxu0 0.0
          %915 = vmatpush1.msra.mxu0 0.0
          %916 = vmatprep.subr.mxu0 0.0
          %917 = vmatpush1.msra.mxu0 0.0
          %918 = vmatprep.subr.mxu0 0.0
          %919 = vmatpush1.msra.mxu0 0.0
          %920 = vmatprep.subr.mxu0 0.0
          %921 = vmatpush1.msra.mxu0 0.0
          %922 = vmatprep.subr.mxu0 0.0
          %923 = vmatpush1.msra.mxu0 0.0
          %924 = vmatprep.subr.mxu0 0.0
          %925 = vmatpush1.msra.mxu0 0.0
          %926 = vmatprep.subr.mxu0 0.0
          %927 = vmatpush1.msra.mxu0 0.0
          %928 = vmatprep.subr.mxu0 0.0
          %929 = vmatpush1.msra.mxu0 0.0
          %930 = vmatprep.subr.mxu0 0.0
          %931 = vmatpush1.msra.mxu0 0.0
          %932 = vmatprep.subr.mxu0 0.0
          %933 = vmatpush1.msra.mxu0 0.0
          %934 = vmatprep.subr.mxu0 0.0
          %935 = vmatpush1.msra.mxu0 0.0
          %936 = vmatprep.subr.mxu0 0.0
          %937 = vmatpush1.msra.mxu0 0.0
          %938 = vmatprep.subr.mxu0 0.0
          %939 = vmatpush1.msra.mxu0 0.0
          %940 = vmatprep.subr.mxu0 0.0
          %941 = vmatpush1.msra.mxu0 0.0
          %942 = vmatprep.subr.mxu0 0.0
          %943 = vmatpush1.msra.mxu0 0.0
          %944 = vmatprep.subr.mxu0 0.0
          %945 = vmatpush1.msra.mxu0 0.0
          %946 = vmatprep.subr.mxu0 0.0
          %947 = vmatpush1.msra.mxu0 0.0
          %948 = vmatprep.subr.mxu0 0.0
          %949 = vmatpush1.msra.mxu0 0.0
          %950 = vmatprep.subr.mxu0 0.0
          %951 = vmatpush1.msra.mxu0 0.0
          %952 = vmatprep.subr.mxu0 0.0
          %953 = vmatpush1.msra.mxu0 0.0
          %954 = vmatprep.subr.mxu0 0.0
          %955 = vmatpush1.msra.mxu0 0.0
          %956 = vmatprep.subr.mxu0 0.0
          %957 = vmatpush1.msra.mxu0 0.0
          %958 = vmatprep.subr.mxu0 0.0
          %959 = vmatpush1.msra.mxu0 0.0
          %960 = vmatprep.subr.mxu0 0.0
          %961 = vmatpush1.msra.mxu0 0.0
          %962 = vmatprep.subr.mxu0 0.0
          %963 = vmatpush1.msra.mxu0 0.0
          %964 = vmatprep.subr.mxu0 0.0
          %965 = vmatpush1.msra.mxu0 0.0
          %966 = vmatprep.subr.mxu0 0.0
          %967 = vmatpush1.msra.mxu0 0.0
          %968 = vmatprep.subr.mxu0 0.0
          %969 = vmatpush1.msra.mxu0 0.0
          %970 = vmatprep.mubr.f32.mxu0 0.0
          %971 = vmatmul.mubr.f32.gmra.mrb[0].mxu0 %v901
          %v972 = vpop.f32.mrb[0].mxu0
          %v973 = vadd.f32 0.0, %v972
          %v974 = vpop.f32.mrb[0].mxu0
          %975 = vmatprep.mubr.f32.mxu0 0.0
          %976 = vmatmul.mubr.f32.gmra.mrb[0].mxu0 %v904
          %v977 = vpop.f32.mrb[0].mxu0
          %v978 = vadd.f32 0.0, %v977
          %v979 = vpop.f32.mrb[0].mxu0
          %980 = vdwg.mxu0
          %v981 = vadd.f32 %v896, %v973
          %v982 = vadd.f32 %v897, %v978
          %983 = vst.msk [vmem:[#allocation6] sm:$0xff] %vm543, %v981
          %984 = vst.msk [vmem:[#allocation6 + $0x8] sm:$0xff] %vm543, %v982
        $region60: #{tpu_custom_call.1} parent=47 // pred_fallthru
          _
        %p985 = scmp.eq.s32.totalorder %s27, 3
        %p986 = pnand %p985, %p874
        %p987 = pneg %p986
        // Predicated region
        $region61: #{tpu_custom_call.1} parent=47 // pred_check
          _
        $region62: #{tpu_custom_call.1} parent=47 // pred_check_branch
          %989 = sbr.rel (%p986) target = $region64
        $region63: #{tpu_custom_call.1} parent=47 // pred_region
          %v990 = vld [vmem:[#allocation6] sm:$0xff]
          %v991 = vld [vmem:[#allocation6 + $0x8] sm:$0xff]
          %992 = vst.msk [vmem:[%s358] sm:$0xff] %vm543, %v990
          %993 = vst.msk [vmem:[%s358 + $0x8] sm:$0xff] %vm543, %v991
        $region64: #{tpu_custom_call.1} parent=47 // pred_fallthru
          _
        %s994 = sand.u32 %s222, 1
        %s995 = scalar_lea.sflag [#allocation8], %s994
        %s996 = sand.u32 %s222, 1
        %s997 = smul.addr %s996, 16
        %s998 = scalar_lea.vmem [#allocation7], %s997
        // Predicated region
        $region65: #{tpu_custom_call.1} parent=47 // pred_check
          %p999 = pneg %p232
        $region66: #{tpu_custom_call.1} parent=47 // pred_check_branch
          %1001 = sbr.rel (%p999) target = $region68
        $region67: #{tpu_custom_call.1} parent=47 // pred_region
          %s1003 = ssub.s32 256, 256
          %1004 = vsyncadd %s995, %s1003
          %s1005 = smul.addr %s26, 2
          %s1006 = smul.addr %s1005, 128
          %s1007 = scalar_lea.hbm %s7, %s1006
          %s1008 = sshll.u32 %s998, 4
          %s1009 = int_to_ptr.vmem [resolvable:$true] %s1008
          %1014 = dma.vmem_to_hbm [thread:$0]  %s1009, 256, %s1007, %s995, 128, 128, 8
        $region68: #{tpu_custom_call.1} parent=47 // pred_fallthru
          _
      $region48: #{tpu_custom_call.1} parent=5 // pred_fallthru
        _
      %p1015 = scmp.le.s32.totalorder 2, %s16
      // Predicated region
      $region69: #{tpu_custom_call.1} parent=5 // pred_check
        %p1016 = pneg %p1015
      $region70: #{tpu_custom_call.1} parent=5 // pred_check_branch
        %1018 = sbr.rel (%p1016) target = $region72
      $region71: #{tpu_custom_call.1} parent=5 // pred_region
        %s1019 = ssub.s32 %s16, 2
        // Predicated region
        $region73: #{tpu_custom_call.1} parent=71 // pred_check
          %p1020 = pneg %p238
        $region74: #{tpu_custom_call.1} parent=71 // pred_check_branch
          %1022 = sbr.rel (%p1020) target = $region76
        $region75: #{tpu_custom_call.1} parent=71 // pred_region
          %s1023 = sand.u32 %s223, 1
          %s1024 = scalar_lea.sflag [#allocation8], %s1023
          %s1025 = sand.u32 %s223, 1
          %s1026 = smul.addr %s1025, 16
          %s1027 = scalar_lea.vmem [#allocation7], %s1026
          %1028 = dma.done %s1024, 256
        $region76: #{tpu_custom_call.1} parent=71 // pred_fallthru
          _
      $region72: #{tpu_custom_call.1} parent=5 // pred_fallthru
        _
    $region6: #{tpu_custom_call.1} parent=1 // loop_footer
      %s20 = sadd.s32 1, %s16
    $region7: #{tpu_custom_call.1} parent=1 // loop_footer_branch
      %15 = sbr.rel target = $region3
    $region8: #{tpu_custom_call.1} parent=1 // loop_exit
      _
    %1029 = vsyncpa [#allocation8], 1
    %s1030 = scalar_lea.sflag [#allocation8], 1
    %1031 = vsyncpa %s1030, 1

</llo_original>
